<compile_context>
chip_gen: v7x
topology: tpu7x:2x2x1
jax: 0.10.0
libtpu: 0.0.40
codegen_flags: <defaults>
</compile_context>

<pallas_src>
import functools

import jax
import jax.numpy as jnp
from jax.experimental import pallas as pl
from jax.experimental.pallas import tpu as pltpu


def _round_up(x: int, m: int) -> int:
    return ((x + m - 1) // m) * m


def _vmem_limit_bytes() -> int:
    """Generation-aware scoped-VMEM limit (~75% of physical VMEM)."""
    try:
        phys = int(pltpu.get_tpu_info().vmem_capacity_bytes)
    except Exception:
        phys = 64 * 1024 * 1024  # conservative fallback (v7x-sized)
    return min(phys * 3 // 4, 100 * 1024 * 1024)


def _choose_tile_n(n_rows, widths, itemsize, wb_bytes, vmem_limit_bytes):
    """Largest row tile (multiple of 8) whose double-buffered I/O plus f32
    intermediates fit the scoped-VMEM budget, after reserving room for the
    (double-buffered) VMEM-resident weights/biases and compiler scratch."""
    in_ch, out_ch = widths[0], widths[-1]
    max_w = max(widths)

    budget = int(vmem_limit_bytes * 0.8) - 2 * wb_bytes  # weights are double-buffered
    budget = max(budget, 4 * 1024 * 1024)

    tile = 1 << 16  # 64K-row ceiling (~8 MiB per input buffer at in_ch=32 f32)
    while tile > 8:
        io = 2 * 2 * tile * in_ch * itemsize   # two inputs, double-buffered
        io += 2 * tile * out_ch * itemsize     # output, double-buffered
        act = 3 * tile * max_w * 4             # live f32 intermediates
        if io + act <= budget:
            break
        tile //= 2
    tile = max(tile, 8)

    n8 = _round_up(max(n_rows, 1), 8)
    tile = min(tile, n8)

    # Split a single-step grid in two only when each half still moves plenty of
    # DMA bytes: v7x shards the "parallel" axis across its 2 TensorCores, while
    # on single-TC v5e/v6e the only cost is one extra ~0.35 us step.
    if tile >= n8 and n_rows >= 16:
        half = _round_up((n_rows + 1) // 2, 8)
        if 2 * half * in_ch * itemsize >= 2 * 1024 * 1024:
            tile = half

    return max(min(tile, n8), 8)


def _mlp_predictor_kernel(num_layers, xi_ref, xj_ref, *rest):
    """rest = (w_0, b_0, w_1, b_1, ..., w_{L-1}, b_{L-1}, o_ref)."""
    o_ref = rest[-1]
    wb_refs = rest[:-1]

    # Feed the MXU in the operands' native precision (bf16 stays bf16);
    # accumulate in f32; bias + ReLU in f32 on the VPU.
    operand_dtype = xi_ref.dtype
    x = xi_ref[...] * xj_ref[...]

    for layer in range(num_layers):
        w = wb_refs[2 * layer][...]                           # (d_in, d_out)
        b = wb_refs[2 * layer + 1][...].astype(jnp.float32)   # (1, d_out)
        y = jnp.dot(x, w, preferred_element_type=jnp.float32) + b
        if layer != num_layers - 1:
            y = jnp.maximum(y, 0.0)  # ReLU on the VPU
            # TODO(synk): F.dropout is identity here (eval/inference mode);
            # training-mode dropout would need pltpu.prng_seed/prng_random_bits.
            x = y.astype(operand_dtype)
        else:
            # TODO(synk): for very large N with out_ch == 1, a lane-dense
            # (1, tile_n) output slab (sublane->lane relayout) would replace
            # the masked 1-lane stores; kept row-major for robust lowering.
            o_ref[...] = y.astype(o_ref.dtype)


def mlp_predictor(x_i: jax.Array, x_j: jax.Array, weights, biases) -> jax.Array:
    """Pallas equivalent of MLPPredictor.forward (eval mode).

    x_i, x_j: (N, in_channels) arrays of the same shape/dtype.
    weights:  list of (d_in, d_out) arrays, one per layer.
    biases:   list of (d_out,) arrays, one per layer.
    returns:  (N, out_channels).
    """
    assert x_i.shape == x_j.shape and x_i.ndim == 2
    num_layers = len(weights)
    assert num_layers >= 1 and len(biases) == num_layers

    N, in_ch = x_i.shape
    widths = [in_ch] + [w.shape[1] for w in weights]
    out_ch = widths[-1]

    # Biases as (1, d_out) so the feature dim sits on lanes.
    biases2d = [jnp.reshape(b, (1, -1)) for b in biases]

    wb_bytes = sum(int(w.size) * w.dtype.itemsize for w in weights)
    wb_bytes += sum(int(b.size) * b.dtype.itemsize for b in biases2d)

    vmem_limit = _vmem_limit_bytes()
    tile_n = _choose_tile_n(N, widths, x_i.dtype.itemsize, wb_bytes, vmem_limit)

    # Ragged last block handled by Pallas masking (rows are independent);
    # no wrapper-side padding or output slicing.
    grid = (pl.cdiv(N, tile_n),)

    in_specs = [
        pl.BlockSpec((tile_n, in_ch), lambda i: (i, 0)),
        pl.BlockSpec((tile_n, in_ch), lambda i: (i, 0)),
    ]
    wb_args = []
    for w, b in zip(weights, biases2d):
        # Full-array blocks with constant index_maps: weights/biases stay
        # VMEM-resident across all grid steps.
        # TODO(synk): if the resident (2x-buffered) weight stack approached
        # ~40 MiB on v7x, stream weights per layer instead of keeping them all.
        in_specs.append(pl.BlockSpec(w.shape, lambda i: (0, 0)))
        in_specs.append(pl.BlockSpec(b.shape, lambda i: (0, 0)))
        wb_args.extend((w, b))

    out = pl.pallas_call(
        functools.partial(_mlp_predictor_kernel, num_layers),
        out_shape=jax.ShapeDtypeStruct((N, out_ch), x_i.dtype),
        grid_spec=pl.GridSpec(
            grid=grid,
            in_specs=in_specs,
            out_specs=pl.BlockSpec((tile_n, out_ch), lambda i: (i, 0)),
        ),
        compiler_params=pltpu.CompilerParams(
            dimension_semantics=("parallel",),
            vmem_limit_bytes=vmem_limit,
        ),
    )(x_i, x_j, *wb_args)

    return out


if __name__ == "__main__":
    key = jax.random.PRNGKey(0)

    # Small shapes consistent with the module: 64 pairs, in=hidden=32, out=1.
    N = 64
    in_channels = 32
    hidden_channels = 32
    out_channels = 1
    num_layers = 3

    keys = jax.random.split(key, 2 + 2 * num_layers)
    x_i = jax.random.normal(keys[0], (N, in_channels), dtype=jnp.float32)
    x_j = jax.random.normal(keys[1], (N, in_channels), dtype=jnp.float32)

    widths = [in_channels] + [hidden_channels] * (num_layers - 1) + [out_channels]
    weights, biases = [], []
    for l in range(num_layers):
        fan_in = widths[l]
        w = jax.random.normal(keys[2 + 2 * l], (widths[l], widths[l + 1]),
                              dtype=jnp.float32) / jnp.sqrt(fan_in)
        b = jax.random.normal(keys[3 + 2 * l], (widths[l + 1],),
                              dtype=jnp.float32) * 0.01
        weights.append(w)
        biases.append(b)

    y = mlp_predictor(x_i, x_j, weights, biases)
    jax.block_until_ready(y)

    # Pure-JAX reference (eval mode: dropout is identity).
    x = x_i * x_j
    for w, b in zip(weights[:-1], biases[:-1]):
        x = jnp.maximum(x @ w + b, 0.0)
    y_ref = x @ weights[-1] + biases[-1]

    assert y.shape == (N, out_channels)
    assert jnp.allclose(y, y_ref, atol=2e-3, rtol=2e-3), float(
        jnp.max(jnp.abs(y - y_ref)))

    print("KERNEL_OK")
</pallas_src>

<mosaic_0001>
module attributes {stable_mosaic.version = 11 : i64} {
  func.func @_mlp_predictor_kernel(%arg0: i32, %arg1: memref<64x32xf32, #tpu.memory_space<vmem>>, %arg2: memref<64x32xf32, #tpu.memory_space<vmem>>, %arg3: memref<32x32xf32, #tpu.memory_space<vmem>>, %arg4: memref<1x32xf32, #tpu.memory_space<vmem>>, %arg5: memref<32x32xf32, #tpu.memory_space<vmem>>, %arg6: memref<1x32xf32, #tpu.memory_space<vmem>>, %arg7: memref<32x1xf32, #tpu.memory_space<vmem>>, %arg8: memref<1x1xf32, #tpu.memory_space<vmem>>, %arg9: memref<64x1xf32, #tpu.memory_space<vmem>>) attributes {dimension_semantics = [#tpu.dimension_semantics<parallel>], iteration_bounds = array<i64: 1>, scalar_prefetch = 0 : i64, scratch_operands = 0 : i64, tpu.core_type = #tpu.core_type<tc>, window_params = [{transform_indices = @transform_0, window_bounds = array<i64: 64, 32>}, {transform_indices = @transform_1, window_bounds = array<i64: 64, 32>}, {pipeline_mode = #tpu.pipeline_mode<synchronous>, transform_indices = @transform_2, window_bounds = array<i64: 32, 32>}, {pipeline_mode = #tpu.pipeline_mode<synchronous>, transform_indices = @transform_3, window_bounds = array<i64: 1, 32>}, {pipeline_mode = #tpu.pipeline_mode<synchronous>, transform_indices = @transform_4, window_bounds = array<i64: 32, 32>}, {pipeline_mode = #tpu.pipeline_mode<synchronous>, transform_indices = @transform_5, window_bounds = array<i64: 1, 32>}, {pipeline_mode = #tpu.pipeline_mode<synchronous>, transform_indices = @transform_6, window_bounds = array<i64: 32, 1>}, {pipeline_mode = #tpu.pipeline_mode<synchronous>, transform_indices = @transform_7, window_bounds = array<i64: 1, 1>}, {transform_indices = @transform_8, window_bounds = array<i64: 64, 1>}]} {
    %c0 = arith.constant 0 : index
    %c0_0 = arith.constant 0 : index
    %0 = vector.load %arg1[%c0, %c0_0] : memref<64x32xf32, #tpu.memory_space<vmem>>, vector<64x32xf32>
    %c0_1 = arith.constant 0 : index
    %c0_2 = arith.constant 0 : index
    %1 = vector.load %arg2[%c0_1, %c0_2] : memref<64x32xf32, #tpu.memory_space<vmem>>, vector<64x32xf32>
    %2 = arith.mulf %0, %1 : vector<64x32xf32>
    %c0_3 = arith.constant 0 : index
    %c0_4 = arith.constant 0 : index
    %3 = vector.load %arg3[%c0_3, %c0_4] : memref<32x32xf32, #tpu.memory_space<vmem>>, vector<32x32xf32>
    %c0_5 = arith.constant 0 : index
    %c0_6 = arith.constant 0 : index
    %4 = vector.load %arg4[%c0_5, %c0_6] : memref<1x32xf32, #tpu.memory_space<vmem>>, vector<1x32xf32>
    %cst = arith.constant dense<0.000000e+00> : vector<64x32xf32>
    %5 = tpu.matmul %2, %3, %cst {dimension_numbers = #tpu.dot_dimension_numbers<[1], [0], [0], [1], [0, 0, 1, 1], [], []>} : vector<64x32xf32>, vector<32x32xf32>, vector<64x32xf32> -> vector<64x32xf32>
    %6 = vector.broadcast %4 : vector<1x32xf32> to vector<64x32xf32>
    %7 = arith.addf %5, %6 : vector<64x32xf32>
    %cst_7 = arith.constant 0.000000e+00 : f32
    %8 = vector.broadcast %cst_7 : f32 to vector<64x32xf32>
    %9 = arith.maximumf %7, %8 : vector<64x32xf32>
    %c0_8 = arith.constant 0 : index
    %c0_9 = arith.constant 0 : index
    %10 = vector.load %arg5[%c0_8, %c0_9] : memref<32x32xf32, #tpu.memory_space<vmem>>, vector<32x32xf32>
    %c0_10 = arith.constant 0 : index
    %c0_11 = arith.constant 0 : index
    %11 = vector.load %arg6[%c0_10, %c0_11] : memref<1x32xf32, #tpu.memory_space<vmem>>, vector<1x32xf32>
    %cst_12 = arith.constant dense<0.000000e+00> : vector<64x32xf32>
    %12 = tpu.matmul %9, %10, %cst_12 {dimension_numbers = #tpu.dot_dimension_numbers<[1], [0], [0], [1], [0, 0, 1, 1], [], []>} : vector<64x32xf32>, vector<32x32xf32>, vector<64x32xf32> -> vector<64x32xf32>
    %13 = vector.broadcast %11 : vector<1x32xf32> to vector<64x32xf32>
    %14 = arith.addf %12, %13 : vector<64x32xf32>
    %cst_13 = arith.constant 0.000000e+00 : f32
    %15 = vector.broadcast %cst_13 : f32 to vector<64x32xf32>
    %16 = arith.maximumf %14, %15 : vector<64x32xf32>
    %c0_14 = arith.constant 0 : index
    %c0_15 = arith.constant 0 : index
    %17 = vector.load %arg7[%c0_14, %c0_15] : memref<32x1xf32, #tpu.memory_space<vmem>>, vector<32x1xf32>
    %c0_16 = arith.constant 0 : index
    %c0_17 = arith.constant 0 : index
    %18 = vector.load %arg8[%c0_16, %c0_17] : memref<1x1xf32, #tpu.memory_space<vmem>>, vector<1x1xf32>
    %cst_18 = arith.constant dense<0.000000e+00> : vector<64x1xf32>
    %19 = tpu.matmul %16, %17, %cst_18 {dimension_numbers = #tpu.dot_dimension_numbers<[1], [0], [0], [1], [0, 0, 1, 1], [], []>} : vector<64x32xf32>, vector<32x1xf32>, vector<64x1xf32> -> vector<64x1xf32>
    %20 = vector.broadcast %18 : vector<1x1xf32> to vector<64x1xf32>
    %21 = arith.addf %19, %20 : vector<64x1xf32>
    %c0_19 = arith.constant 0 : index
    %c0_20 = arith.constant 0 : index
    %22 = vector.load %arg9[%c0_19, %c0_20] : memref<64x1xf32, #tpu.memory_space<vmem>>, vector<64x1xf32>
    tpu.vector_store %arg9[%c0_19, %c0_20], %21 {strides = array<i32>} : memref<64x1xf32, #tpu.memory_space<vmem>>, vector<64x1xf32>,
    return
  }
  func.func @transform_0(%arg0: i32) -> (i32, i32) {
    %c0_i32 = arith.constant 0 : i32
    %c0_i32_0 = arith.constant 0 : i32
    return %arg0, %c0_i32 : i32, i32
  }
  func.func @transform_1(%arg0: i32) -> (i32, i32) {
    %c0_i32 = arith.constant 0 : i32
    %c0_i32_0 = arith.constant 0 : i32
    return %arg0, %c0_i32 : i32, i32
  }
  func.func @transform_2(%arg0: i32) -> (i32, i32) {
    %c0_i32 = arith.constant 0 : i32
    %c0_i32_0 = arith.constant 0 : i32
    %c0_i32_1 = arith.constant 0 : i32
    return %c0_i32, %c0_i32_0 : i32, i32
  }
  func.func @transform_3(%arg0: i32) -> (i32, i32) {
    %c0_i32 = arith.constant 0 : i32
    %c0_i32_0 = arith.constant 0 : i32
    %c0_i32_1 = arith.constant 0 : i32
    return %c0_i32, %c0_i32_0 : i32, i32
  }
  func.func @transform_4(%arg0: i32) -> (i32, i32) {
    %c0_i32 = arith.constant 0 : i32
    %c0_i32_0 = arith.constant 0 : i32
    %c0_i32_1 = arith.constant 0 : i32
    return %c0_i32, %c0_i32_0 : i32, i32
  }
  func.func @transform_5(%arg0: i32) -> (i32, i32) {
    %c0_i32 = arith.constant 0 : i32
    %c0_i32_0 = arith.constant 0 : i32
    %c0_i32_1 = arith.constant 0 : i32
    return %c0_i32, %c0_i32_0 : i32, i32
  }
  func.func @transform_6(%arg0: i32) -> (i32, i32) {
    %c0_i32 = arith.constant 0 : i32
    %c0_i32_0 = arith.constant 0 : i32
    %c0_i32_1 = arith.constant 0 : i32
    return %c0_i32, %c0_i32_0 : i32, i32
  }
  func.func @transform_7(%arg0: i32) -> (i32, i32) {
    %c0_i32 = arith.constant 0 : i32
    %c0_i32_0 = arith.constant 0 : i32
    %c0_i32_1 = arith.constant 0 : i32
    return %c0_i32, %c0_i32_0 : i32, i32
  }
  func.func @transform_8(%arg0: i32) -> (i32, i32) {
    %c0_i32 = arith.constant 0 : i32
    %c0_i32_0 = arith.constant 0 : i32
    return %arg0, %c0_i32 : i32, i32
  }
}

</mosaic_0001>

<llo_original>
// kernel: tpu_custom_call.1
$region0: #{tpu_custom_call.1}
  #allocation0 [shape = 'u32[]', space=smem, size = 0x4, offset = 0x4, fixed_abs, tag = 'smem constant byte address 0x4 - core index']
  #allocation1 [shape = 'u32[144,128]{1,0:T(1,128)}', space=vmem, size = 0x12000, scoped, tag = 'internal scratch']
  #allocation2 [shape = 'f32[1,1]{1,0:T(1,128)S(1)}', space=vmem, size = 0x200, scoped, tag = 'scoped memory for tpu_custom_call.1']
  %s0 = inlined_call_operand.vmem [shape: f32[64,32], index: 0, kind: input, shape index: {}]
  %s1 = inlined_call_operand.vmem [shape: f32[64,32], index: 1, kind: input, shape index: {}]
  %s2 = inlined_call_operand.vmem [shape: f32[32,32], index: 2, kind: input, shape index: {}]
  %s3 = inlined_call_operand.vmem [shape: f32[1,32], index: 3, kind: input, shape index: {}]
  %s4 = inlined_call_operand.vmem [shape: f32[32,32], index: 4, kind: input, shape index: {}]
  %s5 = inlined_call_operand.vmem [shape: f32[1,32], index: 5, kind: input, shape index: {}]
  %s6 = inlined_call_operand.vmem [shape: f32[32,1], index: 6, kind: input, shape index: {}]
  %s7 = inlined_call_operand.<no memory space> [shape: f32[1,1], index: 7, kind: input, shape index: {}]
  %s8 = inlined_call_operand.vmem [shape: f32[64,1], index: 8, kind: output, shape index: {}]
  %s9 = sld [smem:[#allocation0]]
  $region42: #{tpu_custom_call.1} parent=0
    _
  %s11 = ssub.s32 1, %s9
  %s12 = scalar_select 0, %s11, %s9
  %v13 = vstv %s7
  %14 = vst [vmem:[#allocation2] sm:$0x1] %v13
  // Predicated region
  $region2: #{tpu_custom_call.1} parent=0 // pred_check
    _
  $region3: #{tpu_custom_call.1} parent=0 // pred_check_branch
    %16 = sbr.rel (0) target = $region5
  $region4: #{tpu_custom_call.1} parent=0 // pred_region
    _
  $region5: #{tpu_custom_call.1} parent=0 // pred_fallthru
    _
  // Predicated region
  $region6: #{tpu_custom_call.1} parent=0 // pred_check
    _
  $region7: #{tpu_custom_call.1} parent=0 // pred_check_branch
    %18 = sbr.rel (0) target = $region9
  $region8: #{tpu_custom_call.1} parent=0 // pred_region
    _
  $region9: #{tpu_custom_call.1} parent=0 // pred_fallthru
    _
  // Predicated region
  $region10: #{tpu_custom_call.1} parent=0 // pred_check
    _
  $region11: #{tpu_custom_call.1} parent=0 // pred_check_branch
    %20 = sbr.rel (0) target = $region13
  $region12: #{tpu_custom_call.1} parent=0 // pred_region
    _
  $region13: #{tpu_custom_call.1} parent=0 // pred_fallthru
    _
  // Predicated region
  $region14: #{tpu_custom_call.1} parent=0 // pred_check
    _
  $region15: #{tpu_custom_call.1} parent=0 // pred_check_branch
    %22 = sbr.rel (0) target = $region17
  $region16: #{tpu_custom_call.1} parent=0 // pred_region
    _
  $region17: #{tpu_custom_call.1} parent=0 // pred_fallthru
    _
  // Predicated region
  $region18: #{tpu_custom_call.1} parent=0 // pred_check
    _
  $region19: #{tpu_custom_call.1} parent=0 // pred_check_branch
    %24 = sbr.rel (0) target = $region21
  $region20: #{tpu_custom_call.1} parent=0 // pred_region
    _
  $region21: #{tpu_custom_call.1} parent=0 // pred_fallthru
    _
  // Predicated region
  $region22: #{tpu_custom_call.1} parent=0 // pred_check
    _
  $region23: #{tpu_custom_call.1} parent=0 // pred_check_branch
    %26 = sbr.rel (0) target = $region25
  $region24: #{tpu_custom_call.1} parent=0 // pred_region
    _
  $region25: #{tpu_custom_call.1} parent=0 // pred_fallthru
    _
  // Predicated region
  $region26: #{tpu_custom_call.1} parent=0 // pred_check
    _
  $region27: #{tpu_custom_call.1} parent=0 // pred_check_branch
    %28 = sbr.rel (0) target = $region29
  $region28: #{tpu_custom_call.1} parent=0 // pred_region
    _
  $region29: #{tpu_custom_call.1} parent=0 // pred_fallthru
    _
  // Predicated region
  $region30: #{tpu_custom_call.1} parent=0 // pred_check
    _
  $region31: #{tpu_custom_call.1} parent=0 // pred_check_branch
    %30 = sbr.rel (0) target = $region33
  $region32: #{tpu_custom_call.1} parent=0 // pred_region
    _
  $region33: #{tpu_custom_call.1} parent=0 // pred_fallthru
    _
  %v31 = vld [vmem:[%s0] sm:$0xff]
  %v32 = vld [vmem:[%s0 + $0x8] sm:$0xff]
  %v33 = vld [vmem:[%s0 + $0x10] sm:$0xff]
  %v34 = vld [vmem:[%s0 + $0x18] sm:$0xff]
  %v35 = vld [vmem:[%s0 + $0x20] sm:$0xff]
  %v36 = vld [vmem:[%s0 + $0x28] sm:$0xff]
  %v37 = vld [vmem:[%s0 + $0x30] sm:$0xff]
  %v38 = vld [vmem:[%s0 + $0x38] sm:$0xff]
  %v39 = vld [vmem:[%s1] sm:$0xff]
  %v40 = vld [vmem:[%s1 + $0x8] sm:$0xff]
  %v41 = vld [vmem:[%s1 + $0x10] sm:$0xff]
  %v42 = vld [vmem:[%s1 + $0x18] sm:$0xff]
  %v43 = vld [vmem:[%s1 + $0x20] sm:$0xff]
  %v44 = vld [vmem:[%s1 + $0x28] sm:$0xff]
  %v45 = vld [vmem:[%s1 + $0x30] sm:$0xff]
  %v46 = vld [vmem:[%s1 + $0x38] sm:$0xff]
  %v47 = vmul.f32 %v31, %v39
  %v48 = vmul.f32 %v32, %v40
  %v49 = vmul.f32 %v33, %v41
  %v50 = vmul.f32 %v34, %v42
  %v51 = vmul.f32 %v35, %v43
  %v52 = vmul.f32 %v36, %v44
  %v53 = vmul.f32 %v37, %v45
  %v54 = vmul.f32 %v38, %v46
  %v55 = vld [vmem:[%s2] sm:$0xff]
  %v56 = vld [vmem:[%s2 + $0x8] sm:$0xff]
  %v57 = vld [vmem:[%s2 + $0x10] sm:$0xff]
  %v58 = vld [vmem:[%s2 + $0x18] sm:$0xff]
  %v59 = vld [vmem:[%s3] sm:$0x1]
  %v61 = vlaneseq
  %v62 = vshrl.u32 %v61, 7
  %v63 = vsub.s32 0, %v62
  %v64 = vrot.slane %v59, %v63
  %vm66 = vcmask 261120
  %v68 = vsel %vm66, %v47, 0
  %v71 = vsel %vm66, %v48, 0
  %v74 = vsel %vm66, %v49, 0
  %v77 = vsel %vm66, %v50, 0
  %v80 = vsel %vm66, %v51, 0
  %v83 = vsel %vm66, %v52, 0
  %v86 = vsel %vm66, %v53, 0
  %v89 = vsel %vm66, %v54, 0
  %91 = vmatprep.subr.mxu0 0.0
  %92 = vmatpush1.msra.mxu0 %v55
  %93 = vmatprep.subr.mxu0 0.0
  %94 = vmatpush1.msra.mxu0 %v56
  %95 = vmatprep.subr.mxu0 0.0
  %96 = vmatpush1.msra.mxu0 %v57
  %97 = vmatprep.subr.mxu0 0.0
  %98 = vmatpush1.msra.mxu0 %v58
  %99 = vmatprep.subr.mxu0 0.0
  %100 = vmatpush1.msra.mxu0 0.0
  %101 = vmatprep.subr.mxu0 0.0
  %102 = vmatpush1.msra.mxu0 0.0
  %103 = vmatprep.subr.mxu0 0.0
  %104 = vmatpush1.msra.mxu0 0.0
  %105 = vmatprep.subr.mxu0 0.0
  %106 = vmatpush1.msra.mxu0 0.0
  %107 = vmatprep.subr.mxu0 0.0
  %108 = vmatpush1.msra.mxu0 0.0
  %109 = vmatprep.subr.mxu0 0.0
  %110 = vmatpush1.msra.mxu0 0.0
  %111 = vmatprep.subr.mxu0 0.0
  %112 = vmatpush1.msra.mxu0 0.0
  %113 = vmatprep.subr.mxu0 0.0
  %114 = vmatpush1.msra.mxu0 0.0
  %115 = vmatprep.subr.mxu0 0.0
  %116 = vmatpush1.msra.mxu0 0.0
  %117 = vmatprep.subr.mxu0 0.0
  %118 = vmatpush1.msra.mxu0 0.0
  %119 = vmatprep.subr.mxu0 0.0
  %120 = vmatpush1.msra.mxu0 0.0
  %121 = vmatprep.subr.mxu0 0.0
  %122 = vmatpush1.msra.mxu0 0.0
  %123 = vmatprep.subr.mxu0 0.0
  %124 = vmatpush1.msra.mxu0 0.0
  %125 = vmatprep.subr.mxu0 0.0
  %126 = vmatpush1.msra.mxu0 0.0
  %127 = vmatprep.subr.mxu0 0.0
  %128 = vmatpush1.msra.mxu0 0.0
  %129 = vmatprep.subr.mxu0 0.0
  %130 = vmatpush1.msra.mxu0 0.0
  %131 = vmatprep.subr.mxu0 0.0
  %132 = vmatpush1.msra.mxu0 0.0
  %133 = vmatprep.subr.mxu0 0.0
  %134 = vmatpush1.msra.mxu0 0.0
  %135 = vmatprep.subr.mxu0 0.0
  %136 = vmatpush1.msra.mxu0 0.0
  %137 = vmatprep.subr.mxu0 0.0
  %138 = vmatpush1.msra.mxu0 0.0
  %139 = vmatprep.subr.mxu0 0.0
  %140 = vmatpush1.msra.mxu0 0.0
  %141 = vmatprep.subr.mxu0 0.0
  %142 = vmatpush1.msra.mxu0 0.0
  %143 = vmatprep.subr.mxu0 0.0
  %144 = vmatpush1.msra.mxu0 0.0
  %145 = vmatprep.subr.mxu0 0.0
  %146 = vmatpush1.msra.mxu0 0.0
  %147 = vmatprep.subr.mxu0 0.0
  %148 = vmatpush1.msra.mxu0 0.0
  %149 = vmatprep.subr.mxu0 0.0
  %150 = vmatpush1.msra.mxu0 0.0
  %151 = vmatprep.subr.mxu0 0.0
  %152 = vmatpush1.msra.mxu0 0.0
  %153 = vmatprep.subr.mxu0 0.0
  %154 = vmatpush1.msra.mxu0 0.0
  %155 = vmatprep.mubr.f32.mxu0 0.0
  %156 = vmatmul.mubr.f32.gmra.mrb[0].mxu0 %v68
  %v157 = vpop.f32.mrb[0].mxu0
  %v158 = vadd.f32 %v64, %v157
  %v159 = vpop.f32.mrb[0].mxu0
  %160 = vmatprep.mubr.f32.mxu0 0.0
  %161 = vmatmul.mubr.f32.gmra.mrb[0].mxu0 %v71
  %v162 = vpop.f32.mrb[0].mxu0
  %v163 = vadd.f32 %v64, %v162
  %v164 = vpop.f32.mrb[0].mxu0
  %165 = vmatprep.mubr.f32.mxu0 0.0
  %166 = vmatmul.mubr.f32.gmra.mrb[0].mxu0 %v74
  %v167 = vpop.f32.mrb[0].mxu0
  %v168 = vadd.f32 %v64, %v167
  %v169 = vpop.f32.mrb[0].mxu0
  %170 = vmatprep.mubr.f32.mxu0 0.0
  %171 = vmatmul.mubr.f32.gmra.mrb[0].mxu0 %v77
  %v172 = vpop.f32.mrb[0].mxu0
  %v173 = vadd.f32 %v64, %v172
  %v174 = vpop.f32.mrb[0].mxu0
  %175 = vmatprep.mubr.f32.mxu0 0.0
  %176 = vmatmul.mubr.f32.gmra.mrb[0].mxu0 %v80
  %v177 = vpop.f32.mrb[0].mxu0
  %v178 = vadd.f32 %v64, %v177
  %v179 = vpop.f32.mrb[0].mxu0
  %180 = vmatprep.mubr.f32.mxu0 0.0
  %181 = vmatmul.mubr.f32.gmra.mrb[0].mxu0 %v83
  %v182 = vpop.f32.mrb[0].mxu0
  %v183 = vadd.f32 %v64, %v182
  %v184 = vpop.f32.mrb[0].mxu0
  %185 = vmatprep.mubr.f32.mxu0 0.0
  %186 = vmatmul.mubr.f32.gmra.mrb[0].mxu0 %v86
  %v187 = vpop.f32.mrb[0].mxu0
  %v188 = vadd.f32 %v64, %v187
  %v189 = vpop.f32.mrb[0].mxu0
  %190 = vmatprep.mubr.f32.mxu0 0.0
  %191 = vmatmul.mubr.f32.gmra.mrb[0].mxu0 %v89
  %v192 = vpop.f32.mrb[0].mxu0
  %v193 = vadd.f32 %v64, %v192
  %v194 = vpop.f32.mrb[0].mxu0
  %195 = vdwg.mxu0
  %v196 = vmax.f32 %v158, 0.0
  %v197 = vmax.f32 %v163, 0.0
  %v198 = vmax.f32 %v168, 0.0
  %v199 = vmax.f32 %v173, 0.0
  %v200 = vmax.f32 %v178, 0.0
  %v201 = vmax.f32 %v183, 0.0
  %v202 = vmax.f32 %v188, 0.0
  %v203 = vmax.f32 %v193, 0.0
  %v204 = vld [vmem:[%s4] sm:$0xff]
  %v205 = vld [vmem:[%s4 + $0x8] sm:$0xff]
  %v206 = vld [vmem:[%s4 + $0x10] sm:$0xff]
  %v207 = vld [vmem:[%s4 + $0x18] sm:$0xff]
  %v208 = vld [vmem:[%s5] sm:$0x1]
  %v210 = vlaneseq
  %v211 = vshrl.u32 %v210, 7
  %v212 = vsub.s32 0, %v211
  %v213 = vrot.slane %v208, %v212
  %v216 = vsel %vm66, %v196, 0
  %v219 = vsel %vm66, %v197, 0
  %v222 = vsel %vm66, %v198, 0
  %v225 = vsel %vm66, %v199, 0
  %v228 = vsel %vm66, %v200, 0
  %v231 = vsel %vm66, %v201, 0
  %v234 = vsel %vm66, %v202, 0
  %v237 = vsel %vm66, %v203, 0
  %239 = vmatprep.subr.mxu0 0.0
  %240 = vmatpush1.msra.mxu0 %v204
  %241 = vmatprep.subr.mxu0 0.0
  %242 = vmatpush1.msra.mxu0 %v205
  %243 = vmatprep.subr.mxu0 0.0
  %244 = vmatpush1.msra.mxu0 %v206
  %245 = vmatprep.subr.mxu0 0.0
  %246 = vmatpush1.msra.mxu0 %v207
  %247 = vmatprep.subr.mxu0 0.0
  %248 = vmatpush1.msra.mxu0 0.0
  %249 = vmatprep.subr.mxu0 0.0
  %250 = vmatpush1.msra.mxu0 0.0
  %251 = vmatprep.subr.mxu0 0.0
  %252 = vmatpush1.msra.mxu0 0.0
  %253 = vmatprep.subr.mxu0 0.0
  %254 = vmatpush1.msra.mxu0 0.0
  %255 = vmatprep.subr.mxu0 0.0
  %256 = vmatpush1.msra.mxu0 0.0
  %257 = vmatprep.subr.mxu0 0.0
  %258 = vmatpush1.msra.mxu0 0.0
  %259 = vmatprep.subr.mxu0 0.0
  %260 = vmatpush1.msra.mxu0 0.0
  %261 = vmatprep.subr.mxu0 0.0
  %262 = vmatpush1.msra.mxu0 0.0
  %263 = vmatprep.subr.mxu0 0.0
  %264 = vmatpush1.msra.mxu0 0.0
  %265 = vmatprep.subr.mxu0 0.0
  %266 = vmatpush1.msra.mxu0 0.0
  %267 = vmatprep.subr.mxu0 0.0
  %268 = vmatpush1.msra.mxu0 0.0
  %269 = vmatprep.subr.mxu0 0.0
  %270 = vmatpush1.msra.mxu0 0.0
  %271 = vmatprep.subr.mxu0 0.0
  %272 = vmatpush1.msra.mxu0 0.0
  %273 = vmatprep.subr.mxu0 0.0
  %274 = vmatpush1.msra.mxu0 0.0
  %275 = vmatprep.subr.mxu0 0.0
  %276 = vmatpush1.msra.mxu0 0.0
  %277 = vmatprep.subr.mxu0 0.0
  %278 = vmatpush1.msra.mxu0 0.0
  %279 = vmatprep.subr.mxu0 0.0
  %280 = vmatpush1.msra.mxu0 0.0
  %281 = vmatprep.subr.mxu0 0.0
  %282 = vmatpush1.msra.mxu0 0.0
  %283 = vmatprep.subr.mxu0 0.0
  %284 = vmatpush1.msra.mxu0 0.0
  %285 = vmatprep.subr.mxu0 0.0
  %286 = vmatpush1.msra.mxu0 0.0
  %287 = vmatprep.subr.mxu0 0.0
  %288 = vmatpush1.msra.mxu0 0.0
  %289 = vmatprep.subr.mxu0 0.0
  %290 = vmatpush1.msra.mxu0 0.0
  %291 = vmatprep.subr.mxu0 0.0
  %292 = vmatpush1.msra.mxu0 0.0
  %293 = vmatprep.subr.mxu0 0.0
  %294 = vmatpush1.msra.mxu0 0.0
  %295 = vmatprep.subr.mxu0 0.0
  %296 = vmatpush1.msra.mxu0 0.0
  %297 = vmatprep.subr.mxu0 0.0
  %298 = vmatpush1.msra.mxu0 0.0
  %299 = vmatprep.subr.mxu0 0.0
  %300 = vmatpush1.msra.mxu0 0.0
  %301 = vmatprep.subr.mxu0 0.0
  %302 = vmatpush1.msra.mxu0 0.0
  %303 = vmatprep.mubr.f32.mxu0 0.0
  %304 = vmatmul.mubr.f32.gmra.mrb[0].mxu0 %v216
  %v305 = vpop.f32.mrb[0].mxu0
  %v306 = vadd.f32 %v213, %v305
  %v307 = vpop.f32.mrb[0].mxu0
  %308 = vmatprep.mubr.f32.mxu0 0.0
  %309 = vmatmul.mubr.f32.gmra.mrb[0].mxu0 %v219
  %v310 = vpop.f32.mrb[0].mxu0
  %v311 = vadd.f32 %v213, %v310
  %v312 = vpop.f32.mrb[0].mxu0
  %313 = vmatprep.mubr.f32.mxu0 0.0
  %314 = vmatmul.mubr.f32.gmra.mrb[0].mxu0 %v222
  %v315 = vpop.f32.mrb[0].mxu0
  %v316 = vadd.f32 %v213, %v315
  %v317 = vpop.f32.mrb[0].mxu0
  %318 = vmatprep.mubr.f32.mxu0 0.0
  %319 = vmatmul.mubr.f32.gmra.mrb[0].mxu0 %v225
  %v320 = vpop.f32.mrb[0].mxu0
  %v321 = vadd.f32 %v213, %v320
  %v322 = vpop.f32.mrb[0].mxu0
  %323 = vmatprep.mubr.f32.mxu0 0.0
  %324 = vmatmul.mubr.f32.gmra.mrb[0].mxu0 %v228
  %v325 = vpop.f32.mrb[0].mxu0
  %v326 = vadd.f32 %v213, %v325
  %v327 = vpop.f32.mrb[0].mxu0
  %328 = vmatprep.mubr.f32.mxu0 0.0
  %329 = vmatmul.mubr.f32.gmra.mrb[0].mxu0 %v231
  %v330 = vpop.f32.mrb[0].mxu0
  %v331 = vadd.f32 %v213, %v330
  %v332 = vpop.f32.mrb[0].mxu0
  %333 = vmatprep.mubr.f32.mxu0 0.0
  %334 = vmatmul.mubr.f32.gmra.mrb[0].mxu0 %v234
  %v335 = vpop.f32.mrb[0].mxu0
  %v336 = vadd.f32 %v213, %v335
  %v337 = vpop.f32.mrb[0].mxu0
  %338 = vmatprep.mubr.f32.mxu0 0.0
  %339 = vmatmul.mubr.f32.gmra.mrb[0].mxu0 %v237
  %v340 = vpop.f32.mrb[0].mxu0
  %v341 = vadd.f32 %v213, %v340
  %v342 = vpop.f32.mrb[0].mxu0
  %343 = vdwg.mxu0
  %v344 = vmax.f32 %v306, 0.0
  %v345 = vmax.f32 %v311, 0.0
  %v346 = vmax.f32 %v316, 0.0
  %v347 = vmax.f32 %v321, 0.0
  %v348 = vmax.f32 %v326, 0.0
  %v349 = vmax.f32 %v331, 0.0
  %v350 = vmax.f32 %v336, 0.0
  %v351 = vmax.f32 %v341, 0.0
  %v352 = vld [vmem:[%s6] sm:$0xff]
  %v353 = vld [vmem:[%s6 + $0x8] sm:$0xff]
  %v354 = vld [vmem:[%s6 + $0x10] sm:$0xff]
  %v355 = vld [vmem:[%s6 + $0x18] sm:$0xff]
  %v356 = vld [vmem:[#allocation2] sm:$0x1]
  %v358 = vlaneseq
  %v359 = vshrl.u32 %v358, 7
  %v360 = vsub.s32 0, %v359
  %v361 = vrot.slane %v356, %v360
  %v364 = vsel %vm66, %v344, 0
  %v367 = vsel %vm66, %v345, 0
  %v370 = vsel %vm66, %v346, 0
  %v373 = vsel %vm66, %v347, 0
  %v376 = vsel %vm66, %v348, 0
  %v379 = vsel %vm66, %v349, 0
  %v382 = vsel %vm66, %v350, 0
  %v385 = vsel %vm66, %v351, 0
  %387 = vmatprep.subr.mxu0 0.0
  %388 = vmatpush1.msra.mxu0 %v352
  %389 = vmatprep.subr.mxu0 0.0
  %390 = vmatpush1.msra.mxu0 %v353
  %391 = vmatprep.subr.mxu0 0.0
  %392 = vmatpush1.msra.mxu0 %v354
  %393 = vmatprep.subr.mxu0 0.0
  %394 = vmatpush1.msra.mxu0 %v355
  %395 = vmatprep.subr.mxu0 0.0
  %396 = vmatpush1.msra.mxu0 0.0
  %397 = vmatprep.subr.mxu0 0.0
  %398 = vmatpush1.msra.mxu0 0.0
  %399 = vmatprep.subr.mxu0 0.0
  %400 = vmatpush1.msra.mxu0 0.0
  %401 = vmatprep.subr.mxu0 0.0
  %402 = vmatpush1.msra.mxu0 0.0
  %403 = vmatprep.subr.mxu0 0.0
  %404 = vmatpush1.msra.mxu0 0.0
  %405 = vmatprep.subr.mxu0 0.0
  %406 = vmatpush1.msra.mxu0 0.0
  %407 = vmatprep.subr.mxu0 0.0
  %408 = vmatpush1.msra.mxu0 0.0
  %409 = vmatprep.subr.mxu0 0.0
  %410 = vmatpush1.msra.mxu0 0.0
  %411 = vmatprep.subr.mxu0 0.0
  %412 = vmatpush1.msra.mxu0 0.0
  %413 = vmatprep.subr.mxu0 0.0
  %414 = vmatpush1.msra.mxu0 0.0
  %415 = vmatprep.subr.mxu0 0.0
  %416 = vmatpush1.msra.mxu0 0.0
  %417 = vmatprep.subr.mxu0 0.0
  %418 = vmatpush1.msra.mxu0 0.0
  %419 = vmatprep.subr.mxu0 0.0
  %420 = vmatpush1.msra.mxu0 0.0
  %421 = vmatprep.subr.mxu0 0.0
  %422 = vmatpush1.msra.mxu0 0.0
  %423 = vmatprep.subr.mxu0 0.0
  %424 = vmatpush1.msra.mxu0 0.0
  %425 = vmatprep.subr.mxu0 0.0
  %426 = vmatpush1.msra.mxu0 0.0
  %427 = vmatprep.subr.mxu0 0.0
  %428 = vmatpush1.msra.mxu0 0.0
  %429 = vmatprep.subr.mxu0 0.0
  %430 = vmatpush1.msra.mxu0 0.0
  %431 = vmatprep.subr.mxu0 0.0
  %432 = vmatpush1.msra.mxu0 0.0
  %433 = vmatprep.subr.mxu0 0.0
  %434 = vmatpush1.msra.mxu0 0.0
  %435 = vmatprep.subr.mxu0 0.0
  %436 = vmatpush1.msra.mxu0 0.0
  %437 = vmatprep.subr.mxu0 0.0
  %438 = vmatpush1.msra.mxu0 0.0
  %439 = vmatprep.subr.mxu0 0.0
  %440 = vmatpush1.msra.mxu0 0.0
  %441 = vmatprep.subr.mxu0 0.0
  %442 = vmatpush1.msra.mxu0 0.0
  %443 = vmatprep.subr.mxu0 0.0
  %444 = vmatpush1.msra.mxu0 0.0
  %445 = vmatprep.subr.mxu0 0.0
  %446 = vmatpush1.msra.mxu0 0.0
  %447 = vmatprep.subr.mxu0 0.0
  %448 = vmatpush1.msra.mxu0 0.0
  %449 = vmatprep.subr.mxu0 0.0
  %450 = vmatpush1.msra.mxu0 0.0
  %451 = vmatprep.mubr.f32.mxu0 0.0
  %452 = vmatmul.mubr.f32.gmra.mrb[0].mxu0 %v364
  %v453 = vpop.f32.mrb[0].mxu0
  %v454 = vadd.f32 %v361, %v453
  %v455 = vpop.f32.mrb[0].mxu0
  %456 = vmatprep.mubr.f32.mxu0 0.0
  %457 = vmatmul.mubr.f32.gmra.mrb[0].mxu0 %v367
  %v458 = vpop.f32.mrb[0].mxu0
  %v459 = vadd.f32 %v361, %v458
  %v460 = vpop.f32.mrb[0].mxu0
  %461 = vmatprep.mubr.f32.mxu0 0.0
  %462 = vmatmul.mubr.f32.gmra.mrb[0].mxu0 %v370
  %v463 = vpop.f32.mrb[0].mxu0
  %v464 = vadd.f32 %v361, %v463
  %v465 = vpop.f32.mrb[0].mxu0
  %466 = vmatprep.mubr.f32.mxu0 0.0
  %467 = vmatmul.mubr.f32.gmra.mrb[0].mxu0 %v373
  %v468 = vpop.f32.mrb[0].mxu0
  %v469 = vadd.f32 %v361, %v468
  %v470 = vpop.f32.mrb[0].mxu0
  %471 = vmatprep.mubr.f32.mxu0 0.0
  %472 = vmatmul.mubr.f32.gmra.mrb[0].mxu0 %v376
  %v473 = vpop.f32.mrb[0].mxu0
  %v474 = vadd.f32 %v361, %v473
  %v475 = vpop.f32.mrb[0].mxu0
  %476 = vmatprep.mubr.f32.mxu0 0.0
  %477 = vmatmul.mubr.f32.gmra.mrb[0].mxu0 %v379
  %v478 = vpop.f32.mrb[0].mxu0
  %v479 = vadd.f32 %v361, %v478
  %v480 = vpop.f32.mrb[0].mxu0
  %481 = vmatprep.mubr.f32.mxu0 0.0
  %482 = vmatmul.mubr.f32.gmra.mrb[0].mxu0 %v382
  %v483 = vpop.f32.mrb[0].mxu0
  %v484 = vadd.f32 %v361, %v483
  %v485 = vpop.f32.mrb[0].mxu0
  %486 = vmatprep.mubr.f32.mxu0 0.0
  %487 = vmatmul.mubr.f32.gmra.mrb[0].mxu0 %v385
  %v488 = vpop.f32.mrb[0].mxu0
  %v489 = vadd.f32 %v361, %v488
  %v490 = vpop.f32.mrb[0].mxu0
  %491 = vdwg.mxu0
  %vm492 = vcmask 7168
  %493 = vst.msk [vmem:[%s8] sm:$0xff] %vm492, %v454
  %494 = vst.msk [vmem:[%s8 + $0x8] sm:$0xff] %vm492, %v459
  %495 = vst.msk [vmem:[%s8 + $0x10] sm:$0xff] %vm492, %v464
  %496 = vst.msk [vmem:[%s8 + $0x18] sm:$0xff] %vm492, %v469
  %497 = vst.msk [vmem:[%s8 + $0x20] sm:$0xff] %vm492, %v474
  %498 = vst.msk [vmem:[%s8 + $0x28] sm:$0xff] %vm492, %v479
  %499 = vst.msk [vmem:[%s8 + $0x30] sm:$0xff] %vm492, %v484
  %500 = vst.msk [vmem:[%s8 + $0x38] sm:$0xff] %vm492, %v489
  // Predicated region
  $region34: #{tpu_custom_call.1} parent=0 // pred_check
    _
  $region35: #{tpu_custom_call.1} parent=0 // pred_check_branch
    %502 = sbr.rel (0) target = $region37
  $region36: #{tpu_custom_call.1} parent=0 // pred_region
    _
  $region37: #{tpu_custom_call.1} parent=0 // pred_fallthru
    _
  // Predicated region
  $region38: #{tpu_custom_call.1} parent=0 // pred_check
    _
  $region39: #{tpu_custom_call.1} parent=0 // pred_check_branch
    %504 = sbr.rel (0) target = $region41
  $region40: #{tpu_custom_call.1} parent=0 // pred_region
    _
  $region41: #{tpu_custom_call.1} parent=0 // pred_fallthru
    _

</llo_original>
